<compile_context>
chip_gen: v7x
topology: tpu7x:2x2x1
jax: 0.10.0
libtpu: 0.0.40
codegen_flags: <defaults>
</compile_context>

<pallas_src>
import functools

import jax
import jax.numpy as jnp
from jax.experimental import pallas as pl
from jax.experimental.pallas import tpu as pltpu


def fm_broadcast_kernel(lin_ref, s_ref, o_ref):
    # lin_ref: (TM, 1) row term, s_ref: (1, TN) column term.
    # (TM, 1) + (1, TN) -> (TM, TN) lane-dense store; pure VPU + vst.
    o_ref[...] = (lin_ref[...] + s_ref[...]).astype(o_ref.dtype)


def _default_tiles():
    """Pick output-tile sizes per TPU generation (scoped-VMEM aware)."""
    try:
        kind = jax.devices()[0].device_kind.lower()
    except Exception:  # pragma: no cover - defensive; fall back to safe default
        kind = ""
    if ("v6" in kind) or ("v7" in kind):
        # 8 MiB f32 tile; double-buffered 16 MiB fits v6e/v7x 32 MiB scoped VMEM.
        return 1024, 2048
    # v5e / older: 4 MiB tile; double-buffered 8 MiB fits the 16 MiB scoped limit.
    return 512, 2048


@functools.partial(jax.jit, static_argnames=("tile_m", "tile_n"))
def _fm_forward_impl(x, w, b, v, *, tile_m, tile_n):
    B, _ = x.shape

    # --- Hoisted tiny terms (O(B*n*k) flops, O(B) bytes) computed with plain XLA ---
    lin = x @ w.T + b                                        # (B, 1)  row term
    xv = x @ v                                               # (B, k)
    s = 0.5 * jnp.sum(xv * xv - (x * x) @ (v * v), axis=1)   # (B,)
    s = s[None, :]                                           # (1, B)  column term

    # --- Tile selection.  Blocks satisfy the (8,128) rule: each of the last two
    # block dims is divisible by (8, 128) or equal to the full array dim. ---
    TM = tile_m if B >= tile_m else B
    TN = tile_n if B >= tile_n else B

    # Give the v7x megacore at least 2 grid steps along a parallel axis when the
    # whole output would otherwise be a single tile (harmless on single-TC chips).
    if TM == B and TN == B and B > 8 and (B // 2) % 8 == 0:
        TM = B // 2

    grid = (pl.cdiv(B, TM), pl.cdiv(B, TN))

    out_bytes = 4 * B * B
    in_bytes = 4 * (grid[1] * B + grid[0] * B)  # lin re-read per j-tile, s per i-tile
    cost = pl.CostEstimate(
        flops=B * B,               # one add per output element
        transcendentals=0,
        bytes_accessed=out_bytes + in_bytes,
    )

    return pl.pallas_call(
        fm_broadcast_kernel,
        out_shape=jax.ShapeDtypeStruct((B, B), jnp.float32),
        grid_spec=pltpu.PrefetchScalarGridSpec(
            num_scalar_prefetch=0,
            grid=grid,
            in_specs=[
                pl.BlockSpec((TM, 1), lambda i, j: (i, 0)),   # row term (i-tile)
                pl.BlockSpec((1, TN), lambda i, j: (0, j)),   # column term (j-tile)
            ],
            out_specs=pl.BlockSpec((TM, TN), lambda i, j: (i, j)),
        ),
        compiler_params=pltpu.CompilerParams(
            # Both output axes are independent -> megacore sharding on v7x;
            # harmless on single-TC v5e/v6e.
            dimension_semantics=("parallel", "parallel"),
        ),
        cost_estimate=cost,
    )(lin, s)


def fm_forward(x, w, b, v, *, tile_m=None, tile_n=None):
    if tile_m is None or tile_n is None:
        dm, dn = _default_tiles()
        tile_m = tile_m if tile_m is not None else dm
        tile_n = tile_n if tile_n is not None else dn
    return _fm_forward_impl(x, w, b, v, tile_m=tile_m, tile_n=tile_n)


def reference_fm(x, w, b, v):
    lin = x @ w.T + b                      # (B, 1)
    i1 = (x @ v) ** 2                      # (B, k)
    i2 = (x ** 2) @ (v ** 2)               # (B, k)
    s = 0.5 * jnp.sum(i1 - i2, axis=1)     # (B,)
    return lin + s[None, :]                # (B, B)  -- matches PyTorch broadcast


if __name__ == "__main__":
    n, k = 10, 5

    key = jax.random.PRNGKey(0)
    kx, kw, kb, kv, kx2 = jax.random.split(key, 5)

    # Deterministic parameter init (shapes per nn.Linear(n,1) and Parameter(n,k)).
    bound = 1.0 / jnp.sqrt(float(n))
    w = jax.random.uniform(kw, (1, n), jnp.float32, -bound, bound)   # linear.weight
    b = jax.random.uniform(kb, (1, 1), jnp.float32, -bound, bound)   # linear.bias
    v = jax.random.uniform(kv, (n, k), jnp.float32, -0.1, 0.1)       # self.v

    # Small shape consistent with the module.
    B = 8
    x = jax.random.normal(kx, (B, n), jnp.float32)
    out = jax.block_until_ready(fm_forward(x, w, b, v))
    ref = reference_fm(x, w, b, v)
    assert out.shape == (B, B)
    assert jnp.allclose(out, ref, atol=1e-5, rtol=1e-5)

    # Mid-size check exercising multi-tile grid / megacore split path.
    B2 = 384
    x2 = jax.random.normal(kx2, (B2, n), jnp.float32)
    out2 = jax.block_until_ready(fm_forward(x2, w, b, v))
    ref2 = reference_fm(x2, w, b, v)
    assert out2.shape == (B2, B2)
    assert jnp.allclose(out2, ref2, atol=1e-4, rtol=1e-5)

    print("KERNEL_OK")
</pallas_src>

<mosaic_0001>
module attributes {stable_mosaic.version = 11 : i64} {
  func.func @fm_broadcast_kernel(%arg0: i32, %arg1: i32, %arg2: memref<8x1xf32, #tpu.memory_space<vmem>>, %arg3: memref<1x8xf32, #tpu.memory_space<vmem>>, %arg4: memref<8x8xf32, #tpu.memory_space<vmem>>) attributes {dimension_semantics = [#tpu.dimension_semantics<parallel>, #tpu.dimension_semantics<parallel>], iteration_bounds = array<i64: 1, 1>, scalar_prefetch = 0 : i64, scratch_operands = 0 : i64, tpu.core_type = #tpu.core_type<tc>, window_params = [{transform_indices = @transform_0, window_bounds = array<i64: 8, 1>}, {transform_indices = @transform_1, window_bounds = array<i64: 1, 8>}, {transform_indices = @transform_2, window_bounds = array<i64: 8, 8>}]} {
    %c0 = arith.constant 0 : index
    %c0_0 = arith.constant 0 : index
    %0 = vector.load %arg2[%c0, %c0_0] : memref<8x1xf32, #tpu.memory_space<vmem>>, vector<8x1xf32>
    %c0_1 = arith.constant 0 : index
    %c0_2 = arith.constant 0 : index
    %1 = vector.load %arg3[%c0_1, %c0_2] : memref<1x8xf32, #tpu.memory_space<vmem>>, vector<1x8xf32>
    %2 = vector.broadcast %0 : vector<8x1xf32> to vector<8x8xf32>
    %3 = vector.broadcast %1 : vector<1x8xf32> to vector<8x8xf32>
    %4 = arith.addf %2, %3 : vector<8x8xf32>
    %c0_3 = arith.constant 0 : index
    %c0_4 = arith.constant 0 : index
    %5 = vector.load %arg4[%c0_3, %c0_4] : memref<8x8xf32, #tpu.memory_space<vmem>>, vector<8x8xf32>
    tpu.vector_store %arg4[%c0_3, %c0_4], %4 {strides = array<i32>} : memref<8x8xf32, #tpu.memory_space<vmem>>, vector<8x8xf32>,
    return
  }
  func.func @transform_0(%arg0: i32, %arg1: i32) -> (i32, i32) {
    %c0_i32 = arith.constant 0 : i32
    %c0_i32_0 = arith.constant 0 : i32
    return %arg0, %c0_i32 : i32, i32
  }
  func.func @transform_1(%arg0: i32, %arg1: i32) -> (i32, i32) {
    %c0_i32 = arith.constant 0 : i32
    %c0_i32_0 = arith.constant 0 : i32
    return %c0_i32, %arg1 : i32, i32
  }
  func.func @transform_2(%arg0: i32, %arg1: i32) -> (i32, i32) {
    %c0_i32 = arith.constant 0 : i32
    return %arg0, %arg1 : i32, i32
  }
}

</mosaic_0001>

<llo_original>
// kernel: _fm_forward_impl.1
$region0: #{_fm_forward_impl.1}
  #allocation0 [shape = 'u32[]', space=smem, size = 0x4, offset = 0x4, fixed_abs, tag = 'smem constant byte address 0x4 - core index']
  #allocation1 [shape = 'u32[144,128]{1,0:T(1,128)}', space=vmem, size = 0x12000, scoped, tag = 'internal scratch']
  %s0 = inlined_call_operand.vmem [shape: f32[8,1], index: 0, kind: input, shape index: {}]
  %s1 = inlined_call_operand.vmem [shape: f32[1,8], index: 1, kind: input, shape index: {}]
  %s2 = inlined_call_operand.hbm [shape: f32[8,8], index: 2, kind: output, shape index: {}]
  %s3 = sld [smem:[#allocation0]]
  $region18: #{_fm_forward_impl.1} parent=0
    _
  %s5 = ssub.s32 1, %s3
  %s6 = scalar_select 0, %s5, %s3
  $region1: #{_fm_forward_impl.1} parent=0
    #allocation2 [shape = 'u8[4096]{0}', space=vmem, size = 0x1000, scoped, tag = 'output window, operand 0, single buffered']
    #allocation3 [shape = 's32[1]{0}', space=sflag, size = 0x4, scoped, tag = 'scoped memory for _fm_forward_impl.1']
    %7 = vsyncpa [#allocation3], 0
    // Predicated region
    $region2: #{_fm_forward_impl.1} parent=1 // pred_check
      _
    $region3: #{_fm_forward_impl.1} parent=1 // pred_check_branch
      %9 = sbr.rel (0) target = $region5
    $region4: #{_fm_forward_impl.1} parent=1 // pred_region
      _
    $region5: #{_fm_forward_impl.1} parent=1 // pred_fallthru
      _
    // Predicated region
    $region6: #{_fm_forward_impl.1} parent=1 // pred_check
      _
    $region7: #{_fm_forward_impl.1} parent=1 // pred_check_branch
      %11 = sbr.rel (0) target = $region9
    $region8: #{_fm_forward_impl.1} parent=1 // pred_region
      _
    $region9: #{_fm_forward_impl.1} parent=1 // pred_fallthru
      _
    %v12 = vld [vmem:[%s0] sm:$0xff]
    %v13 = vld [vmem:[%s1] sm:$0x1]
    %15 = vset.pattern.permute.xlu0 0
    %16 = vperm.xlu0 %15, %v12
    %v17 = vpop.permute.xlu0 %16
    %v20 = vlaneseq
    %v21 = vshrl.u32 %v20, 7
    %v22 = vsub.s32 0, %v21
    %v23 = vrot.slane %v13, %v22
    %v25 = vadd.f32 %v17, %v23
    %vm26 = vcmask 64512
    %27 = vst.msk [vmem:[#allocation2] sm:$0xff] %vm26, %v25
    // Predicated region
    $region10: #{_fm_forward_impl.1} parent=1 // pred_check
      _
    $region11: #{_fm_forward_impl.1} parent=1 // pred_check_branch
      %29 = sbr.rel (0) target = $region13
    $region12: #{_fm_forward_impl.1} parent=1 // pred_region
      %s31 = ssub.s32 128, 128
      %32 = vsyncadd [#allocation3], %s31
      %s34 = sshll.u32 [#allocation2], 4
      %s35 = int_to_ptr.vmem [resolvable:$true] %s34
      %37 = dma.vmem_to_hbm [thread:$0]  %s35, 128, %s2, [#allocation3]
    $region13: #{_fm_forward_impl.1} parent=1 // pred_fallthru
      _
    // Predicated region
    $region14: #{_fm_forward_impl.1} parent=1 // pred_check
      _
    $region15: #{_fm_forward_impl.1} parent=1 // pred_check_branch
      %39 = sbr.rel (0) target = $region17
    $region16: #{_fm_forward_impl.1} parent=1 // pred_region
      %40 = dma.done [#allocation3], 128
    $region17: #{_fm_forward_impl.1} parent=1 // pred_fallthru
      _
    %41 = vsyncpa [#allocation3], 1

</llo_original>
